<compile_context>
chip_gen: v7x
topology: tpu7x:2x2x1
jax: 0.10.0
libtpu: 0.0.40
codegen_flags: <defaults>
</compile_context>

<pallas_src>
import functools
import math

import jax
import jax.numpy as jnp
from jax import lax
from jax.experimental import pallas as pl
from jax.experimental.pallas import tpu as pltpu


# ------------------------------- Pallas kernel -------------------------------

def _attention_model_kernel(
    x_ref,      # (B, S, Din)   input tokens
    q_ref,      # (V, H)        learned query parameter (shared across batch)
    wkv_ref,    # (H, Din)      key/value projection weight (PyTorch layout)
    vecs_ref,   # (3, H)        rows: b_kv, gamma, beta (stacked -> one DMA)
    wout_ref,   # (Dout, H)     output linear weight (PyTorch layout)
    bout_ref,   # (1, Dout)
    out_ref,    # (B, V, Dout)
    attn_ref,   # (B, V, S)
    *,
    scale,      # 1/sqrt(H), precomputed python float
    eps,        # LayerNorm eps
    causal,     # mask flag (module forward uses False)
):
    B, S, Din = x_ref.shape
    V, H = q_ref.shape
    Dout = bout_ref.shape[-1]

    b_kv = vecs_ref[0:1, :]                       # [1, H]
    gamma = vecs_ref[1:2, :]                      # [1, H]
    beta = vecs_ref[2:3, :]                       # [1, H]

    # key_val = x @ W_kv^T + b_kv  as one flattened [B*S, Din] x [H, Din] dot
    # (contract last dims -> no transpose on W).
    x2d = x_ref[...].reshape(B * S, Din)
    kv2d = lax.dot_general(
        x2d, wkv_ref[...],
        dimension_numbers=(((1,), (1,)), ((), ())),
        preferred_element_type=jnp.float32,
    ) + b_kv                                      # [B*S, H]
    kv = kv2d.reshape(B, S, H)                    # [B, S, H]

    q = q_ref[...]                                # [V, H] (unscaled, for residual)
    q_b = jnp.broadcast_to((q * jnp.float32(scale))[None], (B, V, H))

    # scores = (q * scale) @ kv^T  per batch
    scores = jnp.einsum('bvh,bsh->bvs', q_b, kv,
                        preferred_element_type=jnp.float32)   # [B, V, S]

    if causal:
        row = lax.broadcasted_iota(jnp.int32, (B, V, S), 1)
        col = lax.broadcasted_iota(jnp.int32, (B, V, S), 2)
        # large finite negative instead of -inf (NaN-safe)
        scores = jnp.where(col > row, jnp.float32(-1e30), scores)

    # numerically-stable softmax over the key axis; exact divide so the returned
    # attention weights match the torch reference.
    m = jnp.max(scores, axis=-1, keepdims=True)
    e = jnp.exp(scores - m)
    attn = e / jnp.sum(e, axis=-1, keepdims=True)
    attn_ref[...] = attn                          # [B, V, S]

    # weighted sum over values (= key_val)
    ctx = jnp.einsum('bvs,bsh->bvh', attn, kv,
                     preferred_element_type=jnp.float32)      # [B, V, H]

    # add & LayerNorm over the hidden dim (residual uses the UNscaled query)
    y = ctx + q[None]
    mu = jnp.mean(y, axis=-1, keepdims=True)
    var = jnp.mean(jnp.square(y - mu), axis=-1, keepdims=True)
    normed = (y - mu) * lax.rsqrt(var + jnp.float32(eps))
    normed = normed * gamma + beta                # [B, V, H]

    # logits = normed @ W_out^T + b_out, flattened to [B*V, H] (contract last dims)
    y2d = normed.reshape(B * V, H)
    logits = lax.dot_general(
        y2d, wout_ref[...],
        dimension_numbers=(((1,), (1,)), ((), ())),
        preferred_element_type=jnp.float32,
    ) + bout_ref[...]                             # [B*V, Dout]
    out_ref[...] = logits.reshape(B, V, Dout)


# ------------------------------ module wrapper -------------------------------

def attention_model_forward(params, x, *, mask=False, eps=1e-5):
    """x: [B, S, vocab_size+1] f32 -> (logits [B, V, max_len+1], attn [B, V, S])."""
    B, S, Din = x.shape
    V, H = params["query"].shape[-2:]
    Dout = params["W_out"].shape[0]
    scale = 1.0 / math.sqrt(H)

    # Stack the three (H,) vectors into one operand -> single DMA.
    vecs = jnp.stack([params["b_kv"], params["gamma"], params["beta"]], axis=0)

    kernel = functools.partial(
        _attention_model_kernel, scale=scale, eps=eps, causal=mask)

    flops = 2 * B * (S * Din * H + 2 * V * S * H + V * H * Dout)
    bytes_accessed = 4 * (B * S * Din + V * H + H * Din + 3 * H + Dout * H + Dout
                          + B * V * Dout + B * V * S)

    vmem_spec = pl.BlockSpec(memory_space=pltpu.MemorySpace.VMEM)

    logits, attn_w = pl.pallas_call(
        kernel,
        out_shape=(
            jax.ShapeDtypeStruct((B, V, Dout), jnp.float32),
            jax.ShapeDtypeStruct((B, V, S), jnp.float32),
        ),
        # Single grid step (no grid): whole arrays live in VMEM for the one step;
        # avoids B per-step launch/DMA overheads that dominated at these shapes.
        in_specs=[vmem_spec] * 6,
        out_specs=(vmem_spec, vmem_spec),
        cost_estimate=pl.CostEstimate(
            flops=flops,
            transcendentals=B * V * S,
            bytes_accessed=bytes_accessed,
        ),
    )(
        x,
        params["query"].reshape(V, H),
        params["W_kv"],
        vecs,
        params["W_out"],
        params["b_out"].reshape(1, Dout),
    )
    return logits, attn_w


def init_params(key, *, max_len=10, vocab_size=3, hidden=64):
    """Matches the PyTorch module: query = zeros; nn.Linear-style
    U(-1/sqrt(in), 1/sqrt(in)) init; LayerNorm gamma=1, beta=0."""
    din, dout = vocab_size + 1, max_len + 1
    b1, b2 = din ** -0.5, hidden ** -0.5
    kw1, kb1, kw2, kb2 = jax.random.split(key, 4)
    return {
        "query": jnp.zeros((1, vocab_size, hidden), jnp.float32),
        "W_kv": jax.random.uniform(kw1, (hidden, din), jnp.float32, -b1, b1),
        "b_kv": jax.random.uniform(kb1, (hidden,), jnp.float32, -b1, b1),
        "gamma": jnp.ones((hidden,), jnp.float32),
        "beta": jnp.zeros((hidden,), jnp.float32),
        "W_out": jax.random.uniform(kw2, (dout, hidden), jnp.float32, -b2, b2),
        "b_out": jax.random.uniform(kb2, (dout,), jnp.float32, -b2, b2),
    }


# ----------------------------------- main ------------------------------------

if __name__ == "__main__":
    # Module defaults: max_len=10, vocab_size=3, hidden=64.  Input is
    # [batch, seq, vocab_size+1]; pick batch=2, seq=8.
    B, S = 2, 8
    MAX_LEN, VOCAB, HIDDEN = 10, 3, 64

    root = jax.random.PRNGKey(0)
    k_params, k_x = jax.random.split(root)
    params = init_params(k_params, max_len=MAX_LEN, vocab_size=VOCAB, hidden=HIDDEN)
    x = jax.random.normal(k_x, (B, S, VOCAB + 1), jnp.float32)

    logits, attn_weights = attention_model_forward(params, x, mask=False)

    jax.block_until_ready(logits)
    jax.block_until_ready(attn_weights)
    assert logits.shape == (B, VOCAB, MAX_LEN + 1)
    assert attn_weights.shape == (B, VOCAB, S)
    print("KERNEL_OK")
</pallas_src>

<mosaic_0001>
module attributes {stable_mosaic.version = 11 : i64} {
  func.func @_attention_model_kernel(%arg0: memref<2x8x4xf32, #tpu.memory_space<vmem>>, %arg1: memref<3x64xf32, #tpu.memory_space<vmem>>, %arg2: memref<64x4xf32, #tpu.memory_space<vmem>>, %arg3: memref<3x64xf32, #tpu.memory_space<vmem>>, %arg4: memref<11x64xf32, #tpu.memory_space<vmem>>, %arg5: memref<1x11xf32, #tpu.memory_space<vmem>>, %arg6: memref<2x3x11xf32, #tpu.memory_space<vmem>>, %arg7: memref<2x3x8xf32, #tpu.memory_space<vmem>>) attributes {dimension_semantics = [], scalar_prefetch = 0 : i64, scratch_operands = 0 : i64, tpu.core_type = #tpu.core_type<tc>} {
    %c0 = arith.constant 0 : index
    %c0_0 = arith.constant 0 : index
    %0 = vector.load %arg3[%c0, %c0_0] : memref<3x64xf32, #tpu.memory_space<vmem>>, vector<1x64xf32>
    %c1 = arith.constant 1 : index
    %c0_1 = arith.constant 0 : index
    %1 = vector.load %arg3[%c1, %c0_1] : memref<3x64xf32, #tpu.memory_space<vmem>>, vector<1x64xf32>
    %c2 = arith.constant 2 : index
    %c0_2 = arith.constant 0 : index
    %2 = vector.load %arg3[%c2, %c0_2] : memref<3x64xf32, #tpu.memory_space<vmem>>, vector<1x64xf32>
    %c0_3 = arith.constant 0 : index
    %c0_4 = arith.constant 0 : index
    %c0_5 = arith.constant 0 : index
    %3 = vector.load %arg0[%c0_3, %c0_4, %c0_5] : memref<2x8x4xf32, #tpu.memory_space<vmem>>, vector<2x8x4xf32>
    %4 = vector.shape_cast %3 : vector<2x8x4xf32> to vector<16x4xf32>
    %c0_6 = arith.constant 0 : index
    %c0_7 = arith.constant 0 : index
    %5 = vector.load %arg2[%c0_6, %c0_7] : memref<64x4xf32, #tpu.memory_space<vmem>>, vector<64x4xf32>
    %cst = arith.constant dense<0.000000e+00> : vector<16x64xf32>
    %6 = tpu.matmul %4, %5, %cst {dimension_numbers = #tpu.dot_dimension_numbers<[1], [1], [0], [0], [0, 0, 1, 0], [], []>} : vector<16x4xf32>, vector<64x4xf32>, vector<16x64xf32> -> vector<16x64xf32>
    %7 = vector.broadcast %0 : vector<1x64xf32> to vector<16x64xf32>
    %8 = arith.addf %6, %7 : vector<16x64xf32>
    %9 = vector.shape_cast %8 : vector<16x64xf32> to vector<2x8x64xf32>
    %c0_8 = arith.constant 0 : index
    %c0_9 = arith.constant 0 : index
    %10 = vector.load %arg1[%c0_8, %c0_9] : memref<3x64xf32, #tpu.memory_space<vmem>>, vector<3x64xf32>
    %cst_10 = arith.constant 1.250000e-01 : f32
    %11 = vector.broadcast %cst_10 : f32 to vector<3x64xf32>
    %12 = arith.mulf %10, %11 : vector<3x64xf32>
    %13 = vector.shape_cast %12 : vector<3x64xf32> to vector<1x3x64xf32>
    %14 = vector.shape_cast %13 : vector<1x3x64xf32> to vector<1x3x64xf32>
    %15 = vector.broadcast %14 : vector<1x3x64xf32> to vector<2x3x64xf32>
    "tpu.trace_start"() <{level = 10 : i32, message = "bvh,bsh->bvs"}> : () -> ()
    %cst_11 = arith.constant dense<0.000000e+00> : vector<2x3x8xf32>
    %16 = tpu.matmul %15, %9, %cst_11 {dimension_numbers = #tpu.dot_dimension_numbers<[2], [2], [1], [1], [0, 0, 0, 1, 1, 1], [0], [0]>} : vector<2x3x64xf32>, vector<2x8x64xf32>, vector<2x3x8xf32> -> vector<2x3x8xf32>
    "tpu.trace_stop"() : () -> ()
    %cst_12 = arith.constant dense<0xFF800000> : vector<2x3xf32>
    %17 = vector.multi_reduction <maximumf>, %16, %cst_12 [2] : vector<2x3x8xf32> to vector<2x3xf32>
    %18 = vector.shape_cast %17 : vector<2x3xf32> to vector<2x3x1xf32>
    %19 = vector.broadcast %18 : vector<2x3x1xf32> to vector<2x3x8xf32>
    %20 = arith.subf %16, %19 : vector<2x3x8xf32>
    %21 = math.exp %20 : vector<2x3x8xf32>
    %cst_13 = arith.constant dense<0.000000e+00> : vector<2x3xf32>
    %22 = vector.multi_reduction <add>, %21, %cst_13 [2] : vector<2x3x8xf32> to vector<2x3xf32>
    %23 = vector.shape_cast %22 : vector<2x3xf32> to vector<2x3x1xf32>
    %24 = vector.broadcast %23 : vector<2x3x1xf32> to vector<2x3x8xf32>
    %25 = arith.divf %21, %24 : vector<2x3x8xf32>
    %c0_14 = arith.constant 0 : index
    %c0_15 = arith.constant 0 : index
    %c0_16 = arith.constant 0 : index
    %26 = vector.load %arg7[%c0_14, %c0_15, %c0_16] : memref<2x3x8xf32, #tpu.memory_space<vmem>>, vector<2x3x8xf32>
    tpu.vector_store %arg7[%c0_14, %c0_15, %c0_16], %25 {strides = array<i32>} : memref<2x3x8xf32, #tpu.memory_space<vmem>>, vector<2x3x8xf32>,
    "tpu.trace_start"() <{level = 10 : i32, message = "bvs,bsh->bvh"}> : () -> ()
    %cst_17 = arith.constant dense<0.000000e+00> : vector<2x3x64xf32>
    %27 = tpu.matmul %25, %9, %cst_17 {dimension_numbers = #tpu.dot_dimension_numbers<[2], [1], [1], [2], [0, 0, 0, 1, 1, 2], [0], [0]>} : vector<2x3x8xf32>, vector<2x8x64xf32>, vector<2x3x64xf32> -> vector<2x3x64xf32>
    "tpu.trace_stop"() : () -> ()
    %28 = vector.shape_cast %10 : vector<3x64xf32> to vector<1x3x64xf32>
    %29 = vector.broadcast %28 : vector<1x3x64xf32> to vector<2x3x64xf32>
    %30 = arith.addf %27, %29 : vector<2x3x64xf32>
    %cst_18 = arith.constant dense<0.000000e+00> : vector<2x3xf32>
    %31 = vector.multi_reduction <add>, %30, %cst_18 [2] : vector<2x3x64xf32> to vector<2x3xf32>
    %32 = vector.shape_cast %31 : vector<2x3xf32> to vector<2x3x1xf32>
    %cst_19 = arith.constant 6.400000e+01 : f32
    %33 = vector.broadcast %cst_19 : f32 to vector<2x3x1xf32>
    %34 = arith.divf %32, %33 : vector<2x3x1xf32>
    %35 = vector.broadcast %34 : vector<2x3x1xf32> to vector<2x3x64xf32>
    %36 = arith.subf %30, %35 : vector<2x3x64xf32>
    %37 = arith.mulf %36, %36 : vector<2x3x64xf32>
    %cst_20 = arith.constant dense<0.000000e+00> : vector<2x3xf32>
    %38 = vector.multi_reduction <add>, %37, %cst_20 [2] : vector<2x3x64xf32> to vector<2x3xf32>
    %39 = vector.shape_cast %38 : vector<2x3xf32> to vector<2x3x1xf32>
    %cst_21 = arith.constant 6.400000e+01 : f32
    %40 = vector.broadcast %cst_21 : f32 to vector<2x3x1xf32>
    %41 = arith.divf %39, %40 : vector<2x3x1xf32>
    %42 = vector.broadcast %34 : vector<2x3x1xf32> to vector<2x3x64xf32>
    %43 = arith.subf %30, %42 : vector<2x3x64xf32>
    %cst_22 = arith.constant 9.99999974E-6 : f32
    %44 = vector.broadcast %cst_22 : f32 to vector<2x3x1xf32>
    %45 = arith.addf %41, %44 : vector<2x3x1xf32>
    %46 = math.rsqrt %45 : vector<2x3x1xf32>
    %47 = vector.broadcast %46 : vector<2x3x1xf32> to vector<2x3x64xf32>
    %48 = arith.mulf %43, %47 : vector<2x3x64xf32>
    %49 = vector.shape_cast %1 : vector<1x64xf32> to vector<1x1x64xf32>
    %50 = vector.broadcast %49 : vector<1x1x64xf32> to vector<2x3x64xf32>
    %51 = arith.mulf %48, %50 : vector<2x3x64xf32>
    %52 = vector.shape_cast %2 : vector<1x64xf32> to vector<1x1x64xf32>
    %53 = vector.broadcast %52 : vector<1x1x64xf32> to vector<2x3x64xf32>
    %54 = arith.addf %51, %53 : vector<2x3x64xf32>
    %55 = vector.shape_cast %54 : vector<2x3x64xf32> to vector<6x64xf32>
    %c0_23 = arith.constant 0 : index
    %c0_24 = arith.constant 0 : index
    %56 = vector.load %arg4[%c0_23, %c0_24] : memref<11x64xf32, #tpu.memory_space<vmem>>, vector<11x64xf32>
    %cst_25 = arith.constant dense<0.000000e+00> : vector<6x11xf32>
    %57 = tpu.matmul %55, %56, %cst_25 {dimension_numbers = #tpu.dot_dimension_numbers<[1], [1], [0], [0], [0, 0, 1, 0], [], []>} : vector<6x64xf32>, vector<11x64xf32>, vector<6x11xf32> -> vector<6x11xf32>
    %c0_26 = arith.constant 0 : index
    %c0_27 = arith.constant 0 : index
    %58 = vector.load %arg5[%c0_26, %c0_27] : memref<1x11xf32, #tpu.memory_space<vmem>>, vector<1x11xf32>
    %59 = vector.broadcast %58 : vector<1x11xf32> to vector<6x11xf32>
    %60 = arith.addf %57, %59 : vector<6x11xf32>
    %61 = vector.shape_cast %60 : vector<6x11xf32> to vector<2x3x11xf32>
    %c0_28 = arith.constant 0 : index
    %c0_29 = arith.constant 0 : index
    %c0_30 = arith.constant 0 : index
    %62 = vector.load %arg6[%c0_28, %c0_29, %c0_30] : memref<2x3x11xf32, #tpu.memory_space<vmem>>, vector<2x3x11xf32>
    tpu.vector_store %arg6[%c0_28, %c0_29, %c0_30], %61 {strides = array<i32>} : memref<2x3x11xf32, #tpu.memory_space<vmem>>, vector<2x3x11xf32>,
    return
  }
}

</mosaic_0001>

<llo_original>
// kernel: tpu_custom_call.1
$region0: #{tpu_custom_call.1}
  #allocation0 [shape = 'u32[]', space=smem, size = 0x4, offset = 0x4, fixed_abs, tag = 'smem constant byte address 0x4 - core index']
  #allocation1 [shape = 'u32[144,128]{1,0:T(1,128)}', space=vmem, size = 0x12000, scoped, tag = 'internal scratch']
  %s0 = inlined_call_operand.vmem [shape: f32[2,8,4], index: 0, kind: input, shape index: {}]
  %s1 = inlined_call_operand.vmem [shape: f32[3,64], index: 1, kind: input, shape index: {}]
  %s2 = inlined_call_operand.vmem [shape: f32[64,4], index: 2, kind: input, shape index: {}]
  %s3 = inlined_call_operand.vmem [shape: f32[3,64], index: 3, kind: input, shape index: {}]
  %s4 = inlined_call_operand.vmem [shape: f32[11,64], index: 4, kind: input, shape index: {}]
  %s5 = inlined_call_operand.vmem [shape: f32[1,11], index: 5, kind: input, shape index: {}]
  %s6 = inlined_call_operand.vmem [shape: f32[2,3,11], index: 6, kind: output, shape index: {0}]
  %s7 = inlined_call_operand.vmem [shape: f32[2,3,8], index: 7, kind: output, shape index: {1}]
  %8 = xla_tuple %s6, %s7
  %s9 = sld [smem:[#allocation0]]
  $region42: #{tpu_custom_call.1} parent=0
    _
  %s11 = ssub.s32 1, %s9
  %s12 = scalar_select 0, %s11, %s9
  // Predicated region
  $region2: #{tpu_custom_call.1} parent=0 // pred_check
    _
  $region3: #{tpu_custom_call.1} parent=0 // pred_check_branch
    %14 = sbr.rel (0) target = $region5
  $region4: #{tpu_custom_call.1} parent=0 // pred_region
    _
  $region5: #{tpu_custom_call.1} parent=0 // pred_fallthru
    _
  // Predicated region
  $region6: #{tpu_custom_call.1} parent=0 // pred_check
    _
  $region7: #{tpu_custom_call.1} parent=0 // pred_check_branch
    %16 = sbr.rel (0) target = $region9
  $region8: #{tpu_custom_call.1} parent=0 // pred_region
    _
  $region9: #{tpu_custom_call.1} parent=0 // pred_fallthru
    _
  // Predicated region
  $region10: #{tpu_custom_call.1} parent=0 // pred_check
    _
  $region11: #{tpu_custom_call.1} parent=0 // pred_check_branch
    %18 = sbr.rel (0) target = $region13
  $region12: #{tpu_custom_call.1} parent=0 // pred_region
    _
  $region13: #{tpu_custom_call.1} parent=0 // pred_fallthru
    _
  // Predicated region
  $region14: #{tpu_custom_call.1} parent=0 // pred_check
    _
  $region15: #{tpu_custom_call.1} parent=0 // pred_check_branch
    %20 = sbr.rel (0) target = $region17
  $region16: #{tpu_custom_call.1} parent=0 // pred_region
    _
  $region17: #{tpu_custom_call.1} parent=0 // pred_fallthru
    _
  // Predicated region
  $region18: #{tpu_custom_call.1} parent=0 // pred_check
    _
  $region19: #{tpu_custom_call.1} parent=0 // pred_check_branch
    %22 = sbr.rel (0) target = $region21
  $region20: #{tpu_custom_call.1} parent=0 // pred_region
    _
  $region21: #{tpu_custom_call.1} parent=0 // pred_fallthru
    _
  // Predicated region
  $region22: #{tpu_custom_call.1} parent=0 // pred_check
    _
  $region23: #{tpu_custom_call.1} parent=0 // pred_check_branch
    %24 = sbr.rel (0) target = $region25
  $region24: #{tpu_custom_call.1} parent=0 // pred_region
    _
  $region25: #{tpu_custom_call.1} parent=0 // pred_fallthru
    _
  %v25 = vld [vmem:[%s3] sm:$0x1]
  %v26 = vld [vmem:[%s3 + $0x1] sm:$0x1]
  %v27 = vld [vmem:[%s3 + $0x2] sm:$0x1]
  %v28 = vld [vmem:[%s0] sm:$0xff]
  %v29 = vld [vmem:[%s0 + $0x8] sm:$0xff]
  %v30 = vld [vmem:[%s2] sm:$0xff]
  %v31 = vld [vmem:[%s2 + $0x8] sm:$0xff]
  %v32 = vld [vmem:[%s2 + $0x10] sm:$0xff]
  %v33 = vld [vmem:[%s2 + $0x18] sm:$0xff]
  %v34 = vld [vmem:[%s2 + $0x20] sm:$0xff]
  %v35 = vld [vmem:[%s2 + $0x28] sm:$0xff]
  %v36 = vld [vmem:[%s2 + $0x30] sm:$0xff]
  %v37 = vld [vmem:[%s2 + $0x38] sm:$0xff]
  %v38 = vlaneseq
  %v39 = vshrl.u32 %v38, 7
  %v40 = vsub.s32 0, %v39
  %v41 = vrot.slane %v25, %v40
  %vm42 = vcmask 31744
  %v44 = vsel %vm42, %v28, 0
  %v47 = vsel %vm42, %v29, 0
  %v50 = vsel %vm42, %v30, 0
  %v53 = vsel %vm42, %v31, 0
  %v56 = vsel %vm42, %v32, 0
  %v59 = vsel %vm42, %v33, 0
  %v62 = vsel %vm42, %v34, 0
  %v65 = vsel %vm42, %v35, 0
  %v68 = vsel %vm42, %v36, 0
  %v71 = vsel %vm42, %v37, 0
  %73 = vmatprep.subr.mxu0 0.0
  %74 = vmatpush1.xpose.msra.mxu0 %v50
  %75 = vmatprep.subr.mxu0 0.0
  %76 = vmatpush1.xpose.msra.mxu0 %v53
  %77 = vmatprep.subr.mxu0 0.0
  %78 = vmatpush1.xpose.msra.mxu0 %v56
  %79 = vmatprep.subr.mxu0 0.0
  %80 = vmatpush1.xpose.msra.mxu0 %v59
  %81 = vmatprep.subr.mxu0 0.0
  %82 = vmatpush1.xpose.msra.mxu0 %v62
  %83 = vmatprep.subr.mxu0 0.0
  %84 = vmatpush1.xpose.msra.mxu0 %v65
  %85 = vmatprep.subr.mxu0 0.0
  %86 = vmatpush1.xpose.msra.mxu0 %v68
  %87 = vmatprep.subr.mxu0 0.0
  %88 = vmatpush1.xpose.msra.mxu0 %v71
  %89 = vmatprep.subr.mxu0 0.0
  %90 = vmatpush1.xpose.msra.mxu0 0.0
  %91 = vmatprep.subr.mxu0 0.0
  %92 = vmatpush1.xpose.msra.mxu0 0.0
  %93 = vmatprep.subr.mxu0 0.0
  %94 = vmatpush1.xpose.msra.mxu0 0.0
  %95 = vmatprep.subr.mxu0 0.0
  %96 = vmatpush1.xpose.msra.mxu0 0.0
  %97 = vmatprep.subr.mxu0 0.0
  %98 = vmatpush1.xpose.msra.mxu0 0.0
  %99 = vmatprep.subr.mxu0 0.0
  %100 = vmatpush1.xpose.msra.mxu0 0.0
  %101 = vmatprep.subr.mxu0 0.0
  %102 = vmatpush1.xpose.msra.mxu0 0.0
  %103 = vmatprep.subr.mxu0 0.0
  %104 = vmatpush1.xpose.msra.mxu0 0.0
  %105 = vmatprep.subr.mxu0 0.0
  %106 = vmatpush1.xpose.msra.mxu0 0.0
  %107 = vmatprep.subr.mxu0 0.0
  %108 = vmatpush1.xpose.msra.mxu0 0.0
  %109 = vmatprep.subr.mxu0 0.0
  %110 = vmatpush1.xpose.msra.mxu0 0.0
  %111 = vmatprep.subr.mxu0 0.0
  %112 = vmatpush1.xpose.msra.mxu0 0.0
  %113 = vmatprep.subr.mxu0 0.0
  %114 = vmatpush1.xpose.msra.mxu0 0.0
  %115 = vmatprep.subr.mxu0 0.0
  %116 = vmatpush1.xpose.msra.mxu0 0.0
  %117 = vmatprep.subr.mxu0 0.0
  %118 = vmatpush1.xpose.msra.mxu0 0.0
  %119 = vmatprep.subr.mxu0 0.0
  %120 = vmatpush1.xpose.msra.mxu0 0.0
  %121 = vmatprep.subr.mxu0 0.0
  %122 = vmatpush1.xpose.msra.mxu0 0.0
  %123 = vmatprep.subr.mxu0 0.0
  %124 = vmatpush1.xpose.msra.mxu0 0.0
  %125 = vmatprep.subr.mxu0 0.0
  %126 = vmatpush1.xpose.msra.mxu0 0.0
  %127 = vmatprep.subr.mxu0 0.0
  %128 = vmatpush1.xpose.msra.mxu0 0.0
  %129 = vmatprep.subr.mxu0 0.0
  %130 = vmatpush1.xpose.msra.mxu0 0.0
  %131 = vmatprep.subr.mxu0 0.0
  %132 = vmatpush1.xpose.msra.mxu0 0.0
  %133 = vmatprep.subr.mxu0 0.0
  %134 = vmatpush1.xpose.msra.mxu0 0.0
  %135 = vmatprep.subr.mxu0 0.0
  %136 = vmatpush1.xpose.msra.mxu0 0.0
  %137 = vmatprep.mubr.f32.mxu0 0.0
  %138 = vmatmul.mubr.f32.gmra.mrb[0].mxu0 %v44
  %v139 = vpop.f32.mrb[0].mxu0
  %v140 = vadd.f32 %v41, %v139
  %v141 = vpop.f32.mrb[0].mxu0
  %142 = vmatprep.mubr.f32.mxu0 0.0
  %143 = vmatmul.mubr.f32.gmra.mrb[0].mxu0 %v47
  %v144 = vpop.f32.mrb[0].mxu0
  %v145 = vadd.f32 %v41, %v144
  %v146 = vpop.f32.mrb[0].mxu0
  %147 = vdwg.mxu0
  %v148 = vld [vmem:[%s1] sm:$0x7]
  %v149 = vmul.f32 %v148, 0.125
  %vm150 = vcmask 523264
  %v152 = vsel %vm150, %v149, 0
  %v155 = vsel %vm150, %v140, 0
  %157 = vmatprep.subr.mxu0 0.0
  %158 = vmatpush1.xpose.msra.mxu0 %v155
  %159 = vmatprep.subr.mxu0 0.0
  %160 = vmatpush1.xpose.msra.mxu0 0.0
  %161 = vmatprep.subr.mxu0 0.0
  %162 = vmatpush1.xpose.msra.mxu0 0.0
  %163 = vmatprep.subr.mxu0 0.0
  %164 = vmatpush1.xpose.msra.mxu0 0.0
  %165 = vmatprep.subr.mxu0 0.0
  %166 = vmatpush1.xpose.msra.mxu0 0.0
  %167 = vmatprep.subr.mxu0 0.0
  %168 = vmatpush1.xpose.msra.mxu0 0.0
  %169 = vmatprep.subr.mxu0 0.0
  %170 = vmatpush1.xpose.msra.mxu0 0.0
  %171 = vmatprep.subr.mxu0 0.0
  %172 = vmatpush1.xpose.msra.mxu0 0.0
  %173 = vmatprep.subr.mxu0 0.0
  %174 = vmatpush1.xpose.msra.mxu0 0.0
  %175 = vmatprep.subr.mxu0 0.0
  %176 = vmatpush1.xpose.msra.mxu0 0.0
  %177 = vmatprep.subr.mxu0 0.0
  %178 = vmatpush1.xpose.msra.mxu0 0.0
  %179 = vmatprep.subr.mxu0 0.0
  %180 = vmatpush1.xpose.msra.mxu0 0.0
  %181 = vmatprep.subr.mxu0 0.0
  %182 = vmatpush1.xpose.msra.mxu0 0.0
  %183 = vmatprep.subr.mxu0 0.0
  %184 = vmatpush1.xpose.msra.mxu0 0.0
  %185 = vmatprep.subr.mxu0 0.0
  %186 = vmatpush1.xpose.msra.mxu0 0.0
  %187 = vmatprep.subr.mxu0 0.0
  %188 = vmatpush1.xpose.msra.mxu0 0.0
  %189 = vmatprep.subr.mxu0 0.0
  %190 = vmatpush1.xpose.msra.mxu0 0.0
  %191 = vmatprep.subr.mxu0 0.0
  %192 = vmatpush1.xpose.msra.mxu0 0.0
  %193 = vmatprep.subr.mxu0 0.0
  %194 = vmatpush1.xpose.msra.mxu0 0.0
  %195 = vmatprep.subr.mxu0 0.0
  %196 = vmatpush1.xpose.msra.mxu0 0.0
  %197 = vmatprep.subr.mxu0 0.0
  %198 = vmatpush1.xpose.msra.mxu0 0.0
  %199 = vmatprep.subr.mxu0 0.0
  %200 = vmatpush1.xpose.msra.mxu0 0.0
  %201 = vmatprep.subr.mxu0 0.0
  %202 = vmatpush1.xpose.msra.mxu0 0.0
  %203 = vmatprep.subr.mxu0 0.0
  %204 = vmatpush1.xpose.msra.mxu0 0.0
  %205 = vmatprep.subr.mxu0 0.0
  %206 = vmatpush1.xpose.msra.mxu0 0.0
  %207 = vmatprep.subr.mxu0 0.0
  %208 = vmatpush1.xpose.msra.mxu0 0.0
  %209 = vmatprep.subr.mxu0 0.0
  %210 = vmatpush1.xpose.msra.mxu0 0.0
  %211 = vmatprep.subr.mxu0 0.0
  %212 = vmatpush1.xpose.msra.mxu0 0.0
  %213 = vmatprep.subr.mxu0 0.0
  %214 = vmatpush1.xpose.msra.mxu0 0.0
  %215 = vmatprep.subr.mxu0 0.0
  %216 = vmatpush1.xpose.msra.mxu0 0.0
  %217 = vmatprep.subr.mxu0 0.0
  %218 = vmatpush1.xpose.msra.mxu0 0.0
  %219 = vmatprep.subr.mxu0 0.0
  %220 = vmatpush1.xpose.msra.mxu0 0.0
  %221 = vmatprep.mubr.f32.mxu0 0.0
  %222 = vmatmul.mubr.f32.gmra.mrb[0].mxu0 %v152
  %v223 = vpop.f32.mrb[0].mxu0
  %v224 = vadd.f32 0.0, %v223
  %v225 = vpop.f32.mrb[0].mxu0
  %226 = vdwg.mxu0
  %v228 = vsel %vm150, %v145, 0
  %230 = vmatprep.subr.mxu0 0.0
  %231 = vmatpush1.xpose.msra.mxu0 %v228
  %232 = vmatprep.subr.mxu0 0.0
  %233 = vmatpush1.xpose.msra.mxu0 0.0
  %234 = vmatprep.subr.mxu0 0.0
  %235 = vmatpush1.xpose.msra.mxu0 0.0
  %236 = vmatprep.subr.mxu0 0.0
  %237 = vmatpush1.xpose.msra.mxu0 0.0
  %238 = vmatprep.subr.mxu0 0.0
  %239 = vmatpush1.xpose.msra.mxu0 0.0
  %240 = vmatprep.subr.mxu0 0.0
  %241 = vmatpush1.xpose.msra.mxu0 0.0
  %242 = vmatprep.subr.mxu0 0.0
  %243 = vmatpush1.xpose.msra.mxu0 0.0
  %244 = vmatprep.subr.mxu0 0.0
  %245 = vmatpush1.xpose.msra.mxu0 0.0
  %246 = vmatprep.subr.mxu0 0.0
  %247 = vmatpush1.xpose.msra.mxu0 0.0
  %248 = vmatprep.subr.mxu0 0.0
  %249 = vmatpush1.xpose.msra.mxu0 0.0
  %250 = vmatprep.subr.mxu0 0.0
  %251 = vmatpush1.xpose.msra.mxu0 0.0
  %252 = vmatprep.subr.mxu0 0.0
  %253 = vmatpush1.xpose.msra.mxu0 0.0
  %254 = vmatprep.subr.mxu0 0.0
  %255 = vmatpush1.xpose.msra.mxu0 0.0
  %256 = vmatprep.subr.mxu0 0.0
  %257 = vmatpush1.xpose.msra.mxu0 0.0
  %258 = vmatprep.subr.mxu0 0.0
  %259 = vmatpush1.xpose.msra.mxu0 0.0
  %260 = vmatprep.subr.mxu0 0.0
  %261 = vmatpush1.xpose.msra.mxu0 0.0
  %262 = vmatprep.subr.mxu0 0.0
  %263 = vmatpush1.xpose.msra.mxu0 0.0
  %264 = vmatprep.subr.mxu0 0.0
  %265 = vmatpush1.xpose.msra.mxu0 0.0
  %266 = vmatprep.subr.mxu0 0.0
  %267 = vmatpush1.xpose.msra.mxu0 0.0
  %268 = vmatprep.subr.mxu0 0.0
  %269 = vmatpush1.xpose.msra.mxu0 0.0
  %270 = vmatprep.subr.mxu0 0.0
  %271 = vmatpush1.xpose.msra.mxu0 0.0
  %272 = vmatprep.subr.mxu0 0.0
  %273 = vmatpush1.xpose.msra.mxu0 0.0
  %274 = vmatprep.subr.mxu0 0.0
  %275 = vmatpush1.xpose.msra.mxu0 0.0
  %276 = vmatprep.subr.mxu0 0.0
  %277 = vmatpush1.xpose.msra.mxu0 0.0
  %278 = vmatprep.subr.mxu0 0.0
  %279 = vmatpush1.xpose.msra.mxu0 0.0
  %280 = vmatprep.subr.mxu0 0.0
  %281 = vmatpush1.xpose.msra.mxu0 0.0
  %282 = vmatprep.subr.mxu0 0.0
  %283 = vmatpush1.xpose.msra.mxu0 0.0
  %284 = vmatprep.subr.mxu0 0.0
  %285 = vmatpush1.xpose.msra.mxu0 0.0
  %286 = vmatprep.subr.mxu0 0.0
  %287 = vmatpush1.xpose.msra.mxu0 0.0
  %288 = vmatprep.subr.mxu0 0.0
  %289 = vmatpush1.xpose.msra.mxu0 0.0
  %290 = vmatprep.subr.mxu0 0.0
  %291 = vmatpush1.xpose.msra.mxu0 0.0
  %292 = vmatprep.subr.mxu0 0.0
  %293 = vmatpush1.xpose.msra.mxu0 0.0
  %294 = vmatprep.mubr.f32.mxu0 0.0
  %295 = vmatmul.mubr.f32.gmra.mrb[0].mxu0 %v152
  %v296 = vpop.f32.mrb[0].mxu0
  %v297 = vadd.f32 0.0, %v296
  %v298 = vpop.f32.mrb[0].mxu0
  %299 = vdwg.mxu0
  %vm300 = vcmask 59392
  %v301 = vsel %vm300, %v224, -inf
  %302 = vmax.xlane.f32.xlu0 %v301
  %v303 = vpop.xlane.xlu0 %302
  %v304 = vsel %vm300, %v297, -inf
  %305 = vmax.xlane.f32.xlu0 %v304
  %v306 = vpop.xlane.xlu0 %305
  %v307 = vsub.f32 %v224, %v303
  %v308 = vsub.f32 %v297, %v306
  %v309 = vmul.f32 %v307, 1.442695
  %v310 = vpow.pop %v309
  %v311 = vmul.f32 %v308, 1.442695
  %v312 = vpow.pop %v311
  %v313 = vsel %vm300, %v310, 0.0
  %314 = vadd.xlane.f32.xlu0 %v313
  %v315 = vpop.xlane.xlu0 %314
  %v316 = vsel %vm300, %v312, 0.0
  %317 = vadd.xlane.f32.xlu0 %v316
  %v318 = vpop.xlane.xlu0 %317
  %v319 = vrcp.pop %v315
  %v320 = vmul.f32 %v310, %v319
  %v321 = vrcp.pop %v318
  %v322 = vmul.f32 %v312, %v321
  %323 = vst.msk [vmem:[%s7] sm:$0x7] %vm300, %v320
  %324 = vst.msk [vmem:[%s7 + $0x4] sm:$0x7] %vm300, %v322
  %vm325 = vcmask 64512
  %v327 = vsel %vm325, %v320, 0
  %329 = vmatprep.subr.mxu0 0.0
  %330 = vmatpush1.msra.mxu0 %v140
  %331 = vmatprep.subr.mxu0 0.0
  %332 = vmatpush1.msra.mxu0 0.0
  %333 = vmatprep.subr.mxu0 0.0
  %334 = vmatpush1.msra.mxu0 0.0
  %335 = vmatprep.subr.mxu0 0.0
  %336 = vmatpush1.msra.mxu0 0.0
  %337 = vmatprep.subr.mxu0 0.0
  %338 = vmatpush1.msra.mxu0 0.0
  %339 = vmatprep.subr.mxu0 0.0
  %340 = vmatpush1.msra.mxu0 0.0
  %341 = vmatprep.subr.mxu0 0.0
  %342 = vmatpush1.msra.mxu0 0.0
  %343 = vmatprep.subr.mxu0 0.0
  %344 = vmatpush1.msra.mxu0 0.0
  %345 = vmatprep.subr.mxu0 0.0
  %346 = vmatpush1.msra.mxu0 0.0
  %347 = vmatprep.subr.mxu0 0.0
  %348 = vmatpush1.msra.mxu0 0.0
  %349 = vmatprep.subr.mxu0 0.0
  %350 = vmatpush1.msra.mxu0 0.0
  %351 = vmatprep.subr.mxu0 0.0
  %352 = vmatpush1.msra.mxu0 0.0
  %353 = vmatprep.subr.mxu0 0.0
  %354 = vmatpush1.msra.mxu0 0.0
  %355 = vmatprep.subr.mxu0 0.0
  %356 = vmatpush1.msra.mxu0 0.0
  %357 = vmatprep.subr.mxu0 0.0
  %358 = vmatpush1.msra.mxu0 0.0
  %359 = vmatprep.subr.mxu0 0.0
  %360 = vmatpush1.msra.mxu0 0.0
  %361 = vmatprep.subr.mxu0 0.0
  %362 = vmatpush1.msra.mxu0 0.0
  %363 = vmatprep.subr.mxu0 0.0
  %364 = vmatpush1.msra.mxu0 0.0
  %365 = vmatprep.subr.mxu0 0.0
  %366 = vmatpush1.msra.mxu0 0.0
  %367 = vmatprep.subr.mxu0 0.0
  %368 = vmatpush1.msra.mxu0 0.0
  %369 = vmatprep.subr.mxu0 0.0
  %370 = vmatpush1.msra.mxu0 0.0
  %371 = vmatprep.subr.mxu0 0.0
  %372 = vmatpush1.msra.mxu0 0.0
  %373 = vmatprep.subr.mxu0 0.0
  %374 = vmatpush1.msra.mxu0 0.0
  %375 = vmatprep.subr.mxu0 0.0
  %376 = vmatpush1.msra.mxu0 0.0
  %377 = vmatprep.subr.mxu0 0.0
  %378 = vmatpush1.msra.mxu0 0.0
  %379 = vmatprep.subr.mxu0 0.0
  %380 = vmatpush1.msra.mxu0 0.0
  %381 = vmatprep.subr.mxu0 0.0
  %382 = vmatpush1.msra.mxu0 0.0
  %383 = vmatprep.subr.mxu0 0.0
  %384 = vmatpush1.msra.mxu0 0.0
  %385 = vmatprep.subr.mxu0 0.0
  %386 = vmatpush1.msra.mxu0 0.0
  %387 = vmatprep.subr.mxu0 0.0
  %388 = vmatpush1.msra.mxu0 0.0
  %389 = vmatprep.subr.mxu0 0.0
  %390 = vmatpush1.msra.mxu0 0.0
  %391 = vmatprep.subr.mxu0 0.0
  %392 = vmatpush1.msra.mxu0 0.0
  %393 = vmatprep.mubr.f32.mxu0 0.0
  %394 = vmatmul.mubr.f32.gmra.mrb[0].mxu0 %v327
  %v395 = vpop.f32.mrb[0].mxu0
  %v396 = vadd.f32 %v148, %v395
  %v397 = vpop.f32.mrb[0].mxu0
  %398 = vdwg.mxu0
  %v400 = vsel %vm325, %v322, 0
  %402 = vmatprep.subr.mxu0 0.0
  %403 = vmatpush1.msra.mxu0 %v145
  %404 = vmatprep.subr.mxu0 0.0
  %405 = vmatpush1.msra.mxu0 0.0
  %406 = vmatprep.subr.mxu0 0.0
  %407 = vmatpush1.msra.mxu0 0.0
  %408 = vmatprep.subr.mxu0 0.0
  %409 = vmatpush1.msra.mxu0 0.0
  %410 = vmatprep.subr.mxu0 0.0
  %411 = vmatpush1.msra.mxu0 0.0
  %412 = vmatprep.subr.mxu0 0.0
  %413 = vmatpush1.msra.mxu0 0.0
  %414 = vmatprep.subr.mxu0 0.0
  %415 = vmatpush1.msra.mxu0 0.0
  %416 = vmatprep.subr.mxu0 0.0
  %417 = vmatpush1.msra.mxu0 0.0
  %418 = vmatprep.subr.mxu0 0.0
  %419 = vmatpush1.msra.mxu0 0.0
  %420 = vmatprep.subr.mxu0 0.0
  %421 = vmatpush1.msra.mxu0 0.0
  %422 = vmatprep.subr.mxu0 0.0
  %423 = vmatpush1.msra.mxu0 0.0
  %424 = vmatprep.subr.mxu0 0.0
  %425 = vmatpush1.msra.mxu0 0.0
  %426 = vmatprep.subr.mxu0 0.0
  %427 = vmatpush1.msra.mxu0 0.0
  %428 = vmatprep.subr.mxu0 0.0
  %429 = vmatpush1.msra.mxu0 0.0
  %430 = vmatprep.subr.mxu0 0.0
  %431 = vmatpush1.msra.mxu0 0.0
  %432 = vmatprep.subr.mxu0 0.0
  %433 = vmatpush1.msra.mxu0 0.0
  %434 = vmatprep.subr.mxu0 0.0
  %435 = vmatpush1.msra.mxu0 0.0
  %436 = vmatprep.subr.mxu0 0.0
  %437 = vmatpush1.msra.mxu0 0.0
  %438 = vmatprep.subr.mxu0 0.0
  %439 = vmatpush1.msra.mxu0 0.0
  %440 = vmatprep.subr.mxu0 0.0
  %441 = vmatpush1.msra.mxu0 0.0
  %442 = vmatprep.subr.mxu0 0.0
  %443 = vmatpush1.msra.mxu0 0.0
  %444 = vmatprep.subr.mxu0 0.0
  %445 = vmatpush1.msra.mxu0 0.0
  %446 = vmatprep.subr.mxu0 0.0
  %447 = vmatpush1.msra.mxu0 0.0
  %448 = vmatprep.subr.mxu0 0.0
  %449 = vmatpush1.msra.mxu0 0.0
  %450 = vmatprep.subr.mxu0 0.0
  %451 = vmatpush1.msra.mxu0 0.0
  %452 = vmatprep.subr.mxu0 0.0
  %453 = vmatpush1.msra.mxu0 0.0
  %454 = vmatprep.subr.mxu0 0.0
  %455 = vmatpush1.msra.mxu0 0.0
  %456 = vmatprep.subr.mxu0 0.0
  %457 = vmatpush1.msra.mxu0 0.0
  %458 = vmatprep.subr.mxu0 0.0
  %459 = vmatpush1.msra.mxu0 0.0
  %460 = vmatprep.subr.mxu0 0.0
  %461 = vmatpush1.msra.mxu0 0.0
  %462 = vmatprep.subr.mxu0 0.0
  %463 = vmatpush1.msra.mxu0 0.0
  %464 = vmatprep.subr.mxu0 0.0
  %465 = vmatpush1.msra.mxu0 0.0
  %466 = vmatprep.mubr.f32.mxu0 0.0
  %467 = vmatmul.mubr.f32.gmra.mrb[0].mxu0 %v400
  %v468 = vpop.f32.mrb[0].mxu0
  %v469 = vadd.f32 %v148, %v468
  %v470 = vpop.f32.mrb[0].mxu0
  %471 = vdwg.mxu0
  %vm472 = vcmask 518144
  %v473 = vsel %vm472, %v396, 0.0
  %474 = vadd.xlane.f32.xlu0 %v473
  %v475 = vpop.xlane.xlu0 %474
  %v476 = vsel %vm472, %v469, 0.0
  %477 = vadd.xlane.f32.xlu0 %v476
  %v478 = vpop.xlane.xlu0 %477
  %v479 = vrcp.pop 64.0
  %v480 = vmul.f32 %v475, %v479
  %v481 = vmul.f32 %v478, %v479
  %v482 = vsub.f32 %v396, %v480
  %v483 = vsub.f32 %v469, %v481
  %v484 = vmul.f32 %v482, %v482
  %v485 = vmul.f32 %v483, %v483
  %v486 = vsel %vm472, %v484, 0.0
  %487 = vadd.xlane.f32.xlu0 %v486
  %v488 = vpop.xlane.xlu0 %487
  %v489 = vsel %vm472, %v485, 0.0
  %490 = vadd.xlane.f32.xlu0 %v489
  %v491 = vpop.xlane.xlu0 %490
  %v492 = vmul.f32 %v488, %v479
  %v493 = vmul.f32 %v491, %v479
  %v494 = vadd.f32 %v492, 1e-05
  %v495 = vadd.f32 %v493, 1e-05
  %v496 = vrsqrt.pop %v494
  %v497 = vrsqrt.pop %v495
  %v498 = vmul.f32 %v482, %v496
  %v499 = vmul.f32 %v483, %v497
  %v500 = vlaneseq
  %v501 = vshrl.u32 %v500, 7
  %v502 = vsub.s32 0, %v501
  %v503 = vrot.slane %v26, %v502
  %v504 = vmul.f32 %v498, %v503
  %v505 = vmul.f32 %v499, %v503
  %v506 = vlaneseq
  %v507 = vshrl.u32 %v506, 7
  %v508 = vsub.s32 0, %v507
  %v509 = vrot.slane %v27, %v508
  %v510 = vadd.f32 %v504, %v509
  %v511 = vadd.f32 %v505, %v509
  %v515 = vunpack.c.l.s4 1966171168
  %v516 = vunpack.c.0.s8 %v515
  %v517 = vlaneseq
  %v518 = vshrl.u32 %v517, 7
  %v519 = vsub.s32 %v516, %v518
  %v520 = vrot.slane %v510, %v519
  %v521 = vcombine.high %v520, %v520
  %v523 = vunpack.c.l.s4 1966171168
  %v524 = vunpack.c.0.s8 %v523
  %v525 = vlaneseq
  %v526 = vshrl.u32 %v525, 7
  %v527 = vsub.s32 %v524, %v526
  %v528 = vrot.slane %v520, %v527
  %v530 = vunpack.c.l.s4 1966171168
  %v531 = vunpack.c.0.s8 %v530
  %v532 = vlaneseq
  %v533 = vshrl.u32 %v532, 7
  %v534 = vsub.s32 %v531, %v533
  %v535 = vrot.slane %v521, %v534
  %v536 = vcombine.high %v528, %v528
  %v538 = vunpack.c.l.s4 1966171168
  %v539 = vunpack.c.0.s8 %v538
  %v540 = vlaneseq
  %v541 = vshrl.u32 %v540, 7
  %v542 = vsub.s32 %v539, %v541
  %v543 = vrot.slane %v511, %v542
  %v544 = vcombine.high %v543, %v543
  %v546 = vunpack.c.l.s4 1966171168
  %v547 = vunpack.c.0.s8 %v546
  %v548 = vlaneseq
  %v549 = vshrl.u32 %v548, 7
  %v550 = vsub.s32 %v547, %v549
  %v551 = vrot.slane %v543, %v550
  %v553 = vunpack.c.l.s4 1966171168
  %v554 = vunpack.c.0.s8 %v553
  %v555 = vlaneseq
  %v556 = vshrl.u32 %v555, 7
  %v557 = vsub.s32 %v554, %v556
  %v558 = vrot.slane %v544, %v557
  %v559 = vcombine.high %v551, %v551
  %v560 = vld [vmem:[%s4] sm:$0xff]
  %v561 = vld [vmem:[%s4 + $0x8] sm:$0x7]
  %v562 = vld [vmem:[%s5] sm:$0x1]
  %v564 = vlaneseq
  %v565 = vshrl.u32 %v564, 7
  %v566 = vsub.s32 0, %v565
  %v567 = vrot.slane %v562, %v566
  %v569 = vcombine.low %v528, %v535
  %v570 = vcombine.low %v536, %v551
  %v571 = vcombine.low %v558, %v559
  %v573 = vunpack.c.l.s4 1966171168
  %v574 = vunpack.c.0.s8 %v573
  %v575 = vlaneseq
  %v576 = vshrl.u32 %v575, 7
  %v577 = vsub.s32 %v574, %v576
  %v578 = vrot.slane %v569, %v577
  %v580 = vunpack.c.l.s4 1966171168
  %v581 = vunpack.c.0.s8 %v580
  %v582 = vlaneseq
  %v583 = vshrl.u32 %v582, 7
  %v584 = vsub.s32 %v581, %v583
  %v585 = vrot.slane %v570, %v584
  %v587 = vunpack.c.l.s4 1966171168
  %v588 = vunpack.c.0.s8 %v587
  %v589 = vlaneseq
  %v590 = vshrl.u32 %v589, 7
  %v591 = vsub.s32 %v588, %v590
  %v592 = vrot.slane %v571, %v591
  %v593 = vcombine.low %v578, %v585
  %v595 = vunpack.c.l.s4 1966171168
  %v596 = vunpack.c.0.s8 %v595
  %v597 = vlaneseq
  %v598 = vshrl.u32 %v597, 7
  %v599 = vsub.s32 %v596, %v598
  %v600 = vrot.slane %v593, %v599
  %v602 = vunpack.c.l.s4 1966171168
  %v603 = vunpack.c.0.s8 %v602
  %v604 = vlaneseq
  %v605 = vshrl.u32 %v604, 7
  %v606 = vsub.s32 %v603, %v605
  %v607 = vrot.slane %v592, %v606
  %v608 = vcombine.low %v600, %v607
  %v609 = vsel %vm150, %v608, 0
  %v612 = vsel %vm150, %v560, 0
  %v615 = vsel %vm150, %v561, 0
  %617 = vmatprep.subr.mxu0 0.0
  %618 = vmatpush1.xpose.msra.mxu0 %v612
  %619 = vmatprep.subr.mxu0 0.0
  %620 = vmatpush1.xpose.msra.mxu0 %v615
  %621 = vmatprep.subr.mxu0 0.0
  %622 = vmatpush1.xpose.msra.mxu0 0.0
  %623 = vmatprep.subr.mxu0 0.0
  %624 = vmatpush1.xpose.msra.mxu0 0.0
  %625 = vmatprep.subr.mxu0 0.0
  %626 = vmatpush1.xpose.msra.mxu0 0.0
  %627 = vmatprep.subr.mxu0 0.0
  %628 = vmatpush1.xpose.msra.mxu0 0.0
  %629 = vmatprep.subr.mxu0 0.0
  %630 = vmatpush1.xpose.msra.mxu0 0.0
  %631 = vmatprep.subr.mxu0 0.0
  %632 = vmatpush1.xpose.msra.mxu0 0.0
  %633 = vmatprep.subr.mxu0 0.0
  %634 = vmatpush1.xpose.msra.mxu0 0.0
  %635 = vmatprep.subr.mxu0 0.0
  %636 = vmatpush1.xpose.msra.mxu0 0.0
  %637 = vmatprep.subr.mxu0 0.0
  %638 = vmatpush1.xpose.msra.mxu0 0.0
  %639 = vmatprep.subr.mxu0 0.0
  %640 = vmatpush1.xpose.msra.mxu0 0.0
  %641 = vmatprep.subr.mxu0 0.0
  %642 = vmatpush1.xpose.msra.mxu0 0.0
  %643 = vmatprep.subr.mxu0 0.0
  %644 = vmatpush1.xpose.msra.mxu0 0.0
  %645 = vmatprep.subr.mxu0 0.0
  %646 = vmatpush1.xpose.msra.mxu0 0.0
  %647 = vmatprep.subr.mxu0 0.0
  %648 = vmatpush1.xpose.msra.mxu0 0.0
  %649 = vmatprep.subr.mxu0 0.0
  %650 = vmatpush1.xpose.msra.mxu0 0.0
  %651 = vmatprep.subr.mxu0 0.0
  %652 = vmatpush1.xpose.msra.mxu0 0.0
  %653 = vmatprep.subr.mxu0 0.0
  %654 = vmatpush1.xpose.msra.mxu0 0.0
  %655 = vmatprep.subr.mxu0 0.0
  %656 = vmatpush1.xpose.msra.mxu0 0.0
  %657 = vmatprep.subr.mxu0 0.0
  %658 = vmatpush1.xpose.msra.mxu0 0.0
  %659 = vmatprep.subr.mxu0 0.0
  %660 = vmatpush1.xpose.msra.mxu0 0.0
  %661 = vmatprep.subr.mxu0 0.0
  %662 = vmatpush1.xpose.msra.mxu0 0.0
  %663 = vmatprep.subr.mxu0 0.0
  %664 = vmatpush1.xpose.msra.mxu0 0.0
  %665 = vmatprep.subr.mxu0 0.0
  %666 = vmatpush1.xpose.msra.mxu0 0.0
  %667 = vmatprep.subr.mxu0 0.0
  %668 = vmatpush1.xpose.msra.mxu0 0.0
  %669 = vmatprep.subr.mxu0 0.0
  %670 = vmatpush1.xpose.msra.mxu0 0.0
  %671 = vmatprep.subr.mxu0 0.0
  %672 = vmatpush1.xpose.msra.mxu0 0.0
  %673 = vmatprep.subr.mxu0 0.0
  %674 = vmatpush1.xpose.msra.mxu0 0.0
  %675 = vmatprep.subr.mxu0 0.0
  %676 = vmatpush1.xpose.msra.mxu0 0.0
  %677 = vmatprep.subr.mxu0 0.0
  %678 = vmatpush1.xpose.msra.mxu0 0.0
  %679 = vmatprep.subr.mxu0 0.0
  %680 = vmatpush1.xpose.msra.mxu0 0.0
  %681 = vmatprep.mubr.f32.mxu0 0.0
  %682 = vmatmul.mubr.f32.gmra.mrb[0].mxu0 %v609
  %v683 = vpop.f32.mrb[0].mxu0
  %v684 = vadd.f32 %v567, %v683
  %v685 = vpop.f32.mrb[0].mxu0
  %686 = vdwg.mxu0
  %v688 = vcombine.high %v684, %v684
  %v690 = vunpack.c.l.s4 1966171168
  %v691 = vunpack.c.0.s8 %v690
  %v692 = vlaneseq
  %v693 = vshrl.u32 %v692, 7
  %v694 = vsub.s32 %v691, %v693
  %v695 = vrot.slane %v684, %v694
  %v697 = vunpack.c.l.s4 1966171168
  %v698 = vunpack.c.0.s8 %v697
  %v699 = vlaneseq
  %v700 = vshrl.u32 %v699, 7
  %v701 = vsub.s32 %v698, %v700
  %v702 = vrot.slane %v688, %v701
  %v703 = vcombine.high %v695, %v695
  %v704 = vcombine.high %v702, %v702
  %v706 = vunpack.c.l.s4 1966171168
  %v707 = vunpack.c.0.s8 %v706
  %v708 = vlaneseq
  %v709 = vshrl.u32 %v708, 7
  %v710 = vsub.s32 %v707, %v709
  %v711 = vrot.slane %v695, %v710
  %v713 = vunpack.c.l.s4 1966171168
  %v714 = vunpack.c.0.s8 %v713
  %v715 = vlaneseq
  %v716 = vshrl.u32 %v715, 7
  %v717 = vsub.s32 %v714, %v716
  %v718 = vrot.slane %v702, %v717
  %v720 = vunpack.c.l.s4 1966171168
  %v721 = vunpack.c.0.s8 %v720
  %v722 = vlaneseq
  %v723 = vshrl.u32 %v722, 7
  %v724 = vsub.s32 %v721, %v723
  %v725 = vrot.slane %v703, %v724
  %v727 = vunpack.c.l.s4 1966171168
  %v728 = vunpack.c.0.s8 %v727
  %v729 = vlaneseq
  %v730 = vshrl.u32 %v729, 7
  %v731 = vsub.s32 %v728, %v730
  %v732 = vrot.slane %v704, %v731
  %v733 = vcombine.high %v711, %v711
  %v734 = vcombine.high %v725, %v725
  %v735 = vcombine.low %v711, %v725
  %v737 = vunpack.c.l.s4 1966171168
  %v738 = vunpack.c.0.s8 %v737
  %v739 = vlaneseq
  %v740 = vshrl.u32 %v739, 7
  %v741 = vsub.s32 %v738, %v740
  %v742 = vrot.slane %v735, %v741
  %v744 = vunpack.c.l.s4 1966171168
  %v745 = vunpack.c.0.s8 %v744
  %v746 = vlaneseq
  %v747 = vshrl.u32 %v746, 7
  %v748 = vsub.s32 %v745, %v747
  %v749 = vrot.slane %v733, %v748
  %v750 = vcombine.low %v742, %v749
  %v752 = vunpack.c.l.s4 1966171168
  %v753 = vunpack.c.0.s8 %v752
  %v754 = vlaneseq
  %v755 = vshrl.u32 %v754, 7
  %v756 = vsub.s32 %v753, %v755
  %v757 = vrot.slane %v750, %v756
  %v758 = vcombine.low %v734, %v718
  %v760 = vunpack.c.l.s4 1966171168
  %v761 = vunpack.c.0.s8 %v760
  %v762 = vlaneseq
  %v763 = vshrl.u32 %v762, 7
  %v764 = vsub.s32 %v761, %v763
  %v765 = vrot.slane %v758, %v764
  %v767 = vunpack.c.l.s4 1966171168
  %v768 = vunpack.c.0.s8 %v767
  %v769 = vlaneseq
  %v770 = vshrl.u32 %v769, 7
  %v771 = vsub.s32 %v768, %v770
  %v772 = vrot.slane %v732, %v771
  %v773 = vcombine.low %v765, %v772
  %v775 = vunpack.c.l.s4 1966171168
  %v776 = vunpack.c.0.s8 %v775
  %v777 = vlaneseq
  %v778 = vshrl.u32 %v777, 7
  %v779 = vsub.s32 %v776, %v778
  %v780 = vrot.slane %v773, %v779
  %vm783 = vcmask 83968
  %784 = vst.msk [vmem:[%s6] sm:$0x7] %vm783, %v757
  %785 = vst.msk [vmem:[%s6 + $0x4] sm:$0x7] %vm783, %v780
  // Predicated region
  $region26: #{tpu_custom_call.1} parent=0 // pred_check
    _
  $region27: #{tpu_custom_call.1} parent=0 // pred_check_branch
    %787 = sbr.rel (0) target = $region29
  $region28: #{tpu_custom_call.1} parent=0 // pred_region
    _
  $region29: #{tpu_custom_call.1} parent=0 // pred_fallthru
    _
  // Predicated region
  $region30: #{tpu_custom_call.1} parent=0 // pred_check
    _
  $region31: #{tpu_custom_call.1} parent=0 // pred_check_branch
    %789 = sbr.rel (0) target = $region33
  $region32: #{tpu_custom_call.1} parent=0 // pred_region
    _
  $region33: #{tpu_custom_call.1} parent=0 // pred_fallthru
    _
  // Predicated region
  $region34: #{tpu_custom_call.1} parent=0 // pred_check
    _
  $region35: #{tpu_custom_call.1} parent=0 // pred_check_branch
    %791 = sbr.rel (0) target = $region37
  $region36: #{tpu_custom_call.1} parent=0 // pred_region
    _
  $region37: #{tpu_custom_call.1} parent=0 // pred_fallthru
    _
  // Predicated region
  $region38: #{tpu_custom_call.1} parent=0 // pred_check
    _
  $region39: #{tpu_custom_call.1} parent=0 // pred_check_branch
    %793 = sbr.rel (0) target = $region41
  $region40: #{tpu_custom_call.1} parent=0 // pred_region
    _
  $region41: #{tpu_custom_call.1} parent=0 // pred_fallthru
    _

</llo_original>
